<compile_context>
chip_gen: v7x
topology: tpu7x:2x2x1
jax: 0.10.0
libtpu: 0.0.40
codegen_flags: <defaults>
</compile_context>

<pallas_src>
from functools import partial

import jax
import jax.numpy as jnp
from jax.experimental import pallas as pl
from jax.experimental.pallas import tpu as pltpu


# ----------------------------------------------------------------------------
# configuration / helpers
# ----------------------------------------------------------------------------

_MATMUL_DTYPE = jnp.bfloat16                    # MXU operand dtype (f32 accumulate)
_VMEM_LIMIT_BYTES = 48 * 1024 * 1024            # safe on v5e/v6e (128 MiB) & v7x (64 MiB)
_PAR1 = pltpu.CompilerParams(dimension_semantics=("parallel",),
                             vmem_limit_bytes=_VMEM_LIMIT_BYTES)


def _round_up(x, m):
    return ((x + m - 1) // m) * m


def _pick_row_tile(R, L_pad, cap=512):
    """Largest row tile <= cap that divides R, is a multiple of L_pad, and
    leaves >= 2 grid steps when possible (v7x has 2 TensorCores).
    TODO(synk): drop cap to 256 on v7x if VMEM is still tight at D=768."""
    nseq = R // L_pad
    k = max(1, min(cap // L_pad, nseq))
    while k > 1 and (nseq % k != 0 or nseq // k < 2):
        k -= 1
    return k * L_pad


def _pick_seq_tile(N, L_pad, HM, D, target_bytes=2 << 20):
    """Sequences per K2 grid step: aim for ~2 MiB DMA payloads but keep >= 2
    grid steps when possible (v7x megacore)."""
    per_seq = L_pad * (2 * HM * 2 + D * 2 + 2 * D * 4)  # qf+kf+v bf16, res+out f32
    nb = max(1, min(N, target_bytes // max(per_seq, 1)))
    while nb > 1 and (N % nb != 0 or N // nb < 2):
        nb -= 1
    return nb


# --- single-buffering probe for grid-invariant (weight) blocks --------------

_BUFFERED_OK = None


def _probe_buffered():
    """Check whether pipeline_mode=pl.Buffered(1) is supported by this
    jax/Mosaic build; fall back to default double-buffering if not."""
    if not hasattr(pl, "Buffered"):
        return False
    try:
        def k(x_ref, w_ref, o_ref):
            o_ref[...] = x_ref[...] + w_ref[...]
        f = pl.pallas_call(
            k,
            out_shape=jax.ShapeDtypeStruct((16, 128), jnp.float32),
            grid=(2,),
            in_specs=[pl.BlockSpec((8, 128), lambda i: (i, 0)),
                      pl.BlockSpec((8, 128), lambda i: (0, 0),
                                   pipeline_mode=pl.Buffered(1))],
            out_specs=pl.BlockSpec((8, 128), lambda i: (i, 0)),
            compiler_params=_PAR1,
        )
        jax.block_until_ready(f(jnp.zeros((16, 128), jnp.float32),
                                jnp.zeros((8, 128), jnp.float32)))
        return True
    except Exception:
        return False


def _const_spec(shape):
    """BlockSpec for a grid-invariant block: constant index map, single
    buffered when supported (halves resident VMEM for weights)."""
    global _BUFFERED_OK
    if _BUFFERED_OK is None:
        _BUFFERED_OK = _probe_buffered()
    index_map = lambda *args: (0,) * len(shape)
    if _BUFFERED_OK:
        return pl.BlockSpec(shape, index_map, pipeline_mode=pl.Buffered(1))
    return pl.BlockSpec(shape, index_map)


# --- in-kernel math ----------------------------------------------------------

_SQRT_HALF = 0.7071067811865476


def _erf_f32(x):
    # Abramowitz & Stegun 7.1.26 (|err| <= 1.5e-7).  The 1/(1+p*z) rational is
    # routed through the EUP approximate reciprocal so the polynomial does not
    # load the VALU slot once the matmuls are bf16 (v6e/v7x feedback).
    a1, a2, a3, a4, a5 = (0.254829592, -0.284496736, 1.421413741,
                          -1.453152027, 1.061405429)
    p = 0.3275911
    s = jnp.where(x >= 0.0, 1.0, -1.0)
    z = jnp.abs(x)
    t = pl.reciprocal(1.0 + p * z, approx=True)
    poly = ((((a5 * t + a4) * t + a3) * t + a2) * t + a1) * t
    return s * (1.0 - poly * jnp.exp(-z * z))


def _gelu_exact(x):
    # matches torch.nn.functional.gelu (erf form) to ~f32 precision
    return 0.5 * x * (1.0 + _erf_f32(x * _SQRT_HALF))


def _layernorm(x, g, b, eps):
    mean = jnp.mean(x, axis=-1, keepdims=True)
    var = jnp.mean((x - mean) ** 2, axis=-1, keepdims=True)
    return (x - mean) * jax.lax.rsqrt(var + eps) * g + b


# ----------------------------------------------------------------------------
# Kernel 1: fused 5-way projection + rotary + feature map + key mask
# ----------------------------------------------------------------------------

def _qkv_rope_feat_kernel(x_ref, w5_ref, b5_ref, cos_ref, sin_ref, om_ref,
                          km_ref, qf_ref, kf_ref, v_ref, *, D, L_pad):
    x = x_ref[...].astype(_MATMUL_DTYPE)
    # single MXU matmul:  x @ [Wq | Wq@P | Wk | Wk@P | Wv]
    h = jnp.dot(x, w5_ref[...], preferred_element_type=jnp.float32) + b5_ref[...]
    qb, qr = h[:, 0 * D:1 * D], h[:, 1 * D:2 * D]
    kb, kr = h[:, 2 * D:3 * D], h[:, 3 * D:4 * D]
    v = h[:, 4 * D:5 * D]

    # rotary: q*cos + rotate_half(q)*sin; cos/sin are (L_pad, D) VMEM tables,
    # the row tile is a whole number of sequences so a metadata-only reshape
    # broadcasts them (no (R, D) table in HBM).
    nb = x.shape[0] // L_pad
    cos = cos_ref[...]
    sin = sin_ref[...]
    q = (qb.reshape(nb, L_pad, D) * cos + qr.reshape(nb, L_pad, D) * sin)
    k = (kb.reshape(nb, L_pad, D) * cos + kr.reshape(nb, L_pad, D) * sin)
    q = q.reshape(nb * L_pad, D)
    k = k.reshape(nb * L_pad, D)

    # GeneralizedRandomFeatures: relu(q @ omega) per head (omega block-diag)
    om = om_ref[...]
    qf = jnp.maximum(jnp.dot(q.astype(_MATMUL_DTYPE), om,
                             preferred_element_type=jnp.float32), 0.0)
    kf = jnp.maximum(jnp.dot(k.astype(_MATMUL_DTYPE), om,
                             preferred_element_type=jnp.float32), 0.0)
    kf = kf * km_ref[...]                          # LengthMask on keys
    qf_ref[...] = qf.astype(qf_ref.dtype)
    kf_ref[...] = kf.astype(kf_ref.dtype)
    v_ref[...] = v.astype(v_ref.dtype)


def fused_qkv_rope_featuremap(x2, lp, cos_t, sin_t, kmask_col, tile_r, L_pad):
    R, D = x2.shape
    HM = lp["omega_bd"].shape[1]
    row_D = pl.BlockSpec((tile_r, D), lambda i: (i, 0))
    row_HM = pl.BlockSpec((tile_r, HM), lambda i: (i, 0))
    return pl.pallas_call(
        partial(_qkv_rope_feat_kernel, D=D, L_pad=L_pad),
        out_shape=(jax.ShapeDtypeStruct((R, HM), _MATMUL_DTYPE),
                   jax.ShapeDtypeStruct((R, HM), _MATMUL_DTYPE),
                   jax.ShapeDtypeStruct((R, D), _MATMUL_DTYPE)),
        grid=(R // tile_r,),
        in_specs=[row_D,
                  _const_spec(lp["w5"].shape),
                  _const_spec(lp["b5"].shape),
                  _const_spec(cos_t.shape),
                  _const_spec(sin_t.shape),
                  _const_spec(lp["omega_bd"].shape),
                  pl.BlockSpec((tile_r, 1), lambda i: (i, 0))],
        out_specs=(row_HM, row_HM, row_D),
        compiler_params=_PAR1,
    )(x2, lp["w5"], lp["b5"], cos_t, sin_t, lp["omega_bd"], kmask_col)


# ----------------------------------------------------------------------------
# Kernel 2: linear attention + out-projection + residual + LayerNorm1 (fused)
# ----------------------------------------------------------------------------

def _attn_proj_ln_kernel(qf_ref, kf_ref, v_ref, res_ref, wo_ref, bo_ref,
                         g_ref, b_ref, o_ref, *, H, M, Dh, eps_attn, eps_ln):
    HM, D = H * M, H * Dh
    qf = qf_ref[...]                               # (nb, L, HM) bf16
    kf = kf_ref[...]                               # (nb, L, HM) bf16 (masked)
    v = v_ref[...]                                 # (nb, L, D)  bf16

    # head-block indicator generated in-kernel (2 iotas + compare; no HBM DMA)
    row_h = jax.lax.broadcasted_iota(jnp.int32, (HM, D), 0) // M
    col_h = jax.lax.broadcasted_iota(jnp.int32, (HM, D), 1) // Dh
    hb = (row_h == col_h).astype(jnp.float32)

    # per-head KV = K^T V: dense batched matmul, then mask to the head blocks.
    # TODO(synk): on v5e (128-wide MXU) switch to per-head batched dots to
    # avoid the H-fold dense-FLOP waste; on v6e/v7x the dense layout wins.
    kv = jnp.einsum("blf,bld->bfd", kf, v,
                    preferred_element_type=jnp.float32) * hb         # (nb, HM, D)
    num = jnp.einsum("blf,bfd->bld", qf, kv.astype(_MATMUL_DTYPE),
                     preferred_element_type=jnp.float32)             # (nb, L, D)

    # normalizer Z = 1 / (Q . sum_s K + eps), broadcast per head over Dh
    ksum = jnp.sum(kf.astype(jnp.float32), axis=1, keepdims=True)    # (nb, 1, HM)
    qk = (qf.astype(jnp.float32) * ksum).astype(_MATMUL_DTYPE)
    denom = jnp.einsum("blf,fd->bld", qk, hb.astype(_MATMUL_DTYPE),
                       preferred_element_type=jnp.float32) + eps_attn
    att = num * pl.reciprocal(denom, approx=False)

    # fused epilogue: out-projection + residual + LayerNorm1 (no HBM round trip)
    y = jnp.einsum("bld,de->ble", att.astype(_MATMUL_DTYPE), wo_ref[...],
                   preferred_element_type=jnp.float32) + bo_ref[...]
    h = y + res_ref[...]
    o_ref[...] = _layernorm(h, g_ref[...], b_ref[...], eps_ln).astype(o_ref.dtype)


def attn_proj_residual_ln(qf, kf, v, res, lp, H, M, nb,
                          eps_attn=1e-6, eps_ln=1e-5):
    N, L, HM = qf.shape
    D = v.shape[-1]
    Dh = D // H
    blk_HM = pl.BlockSpec((nb, L, HM), lambda n: (n, 0, 0))
    blk_D = pl.BlockSpec((nb, L, D), lambda n: (n, 0, 0))
    return pl.pallas_call(
        partial(_attn_proj_ln_kernel, H=H, M=M, Dh=Dh,
                eps_attn=eps_attn, eps_ln=eps_ln),
        out_shape=jax.ShapeDtypeStruct((N, L, D), jnp.float32),
        grid=(N // nb,),
        in_specs=[blk_HM, blk_HM, blk_D, blk_D,
                  _const_spec(lp["wo"].shape),
                  _const_spec(lp["bo"].shape),
                  _const_spec(lp["ln1_g"].shape),
                  _const_spec(lp["ln1_b"].shape)],
        out_specs=blk_D,
        compiler_params=_PAR1,
    )(qf, kf, v, res, lp["wo"], lp["bo"], lp["ln1_g"], lp["ln1_b"])


# ----------------------------------------------------------------------------
# Kernel 3: FFN (w1 -> exact GELU -> w2) + residual + LayerNorm2, fully fused
# ----------------------------------------------------------------------------

def _ffn_res_ln_kernel(x_ref, w1_ref, b1_ref, w2_ref, b2_ref, g_ref, beta_ref,
                       o_ref, *, eps):
    x = x_ref[...]
    h = jnp.dot(x.astype(_MATMUL_DTYPE), w1_ref[...],
                preferred_element_type=jnp.float32) + b1_ref[...]
    h = _gelu_exact(h)                            # (tile_r, F) stays in VMEM
    y = jnp.dot(h.astype(_MATMUL_DTYPE), w2_ref[...],
                preferred_element_type=jnp.float32) + b2_ref[...]
    r = x + y
    o_ref[...] = _layernorm(r, g_ref[...], beta_ref[...], eps).astype(o_ref.dtype)


def ffn_residual_ln(x, lp, tile_r, eps=1e-5):
    R, D = x.shape
    row_D = pl.BlockSpec((tile_r, D), lambda i: (i, 0))
    return pl.pallas_call(
        partial(_ffn_res_ln_kernel, eps=eps),
        out_shape=jax.ShapeDtypeStruct((R, D), x.dtype),
        grid=(R // tile_r,),
        in_specs=[row_D,
                  _const_spec(lp["w1"].shape), _const_spec(lp["b1"].shape),
                  _const_spec(lp["w2"].shape), _const_spec(lp["b2"].shape),
                  _const_spec(lp["ln2_g"].shape), _const_spec(lp["ln2_b"].shape)],
        out_specs=row_D,
        compiler_params=_PAR1,
    )(x, lp["w1"], lp["b1"], lp["w2"], lp["b2"], lp["ln2_g"], lp["ln2_b"])


# ----------------------------------------------------------------------------
# Final LayerNorm kernel (fast_transformers encoder final norm)
# ----------------------------------------------------------------------------

def _ln_kernel(x_ref, g_ref, b_ref, o_ref, *, eps):
    o_ref[...] = _layernorm(x_ref[...], g_ref[...], b_ref[...],
                            eps).astype(o_ref.dtype)


def pallas_layernorm(x, g, b, tile_r, eps=1e-5):
    R, D = x.shape
    row_D = pl.BlockSpec((tile_r, D), lambda i: (i, 0))
    return pl.pallas_call(
        partial(_ln_kernel, eps=eps),
        out_shape=jax.ShapeDtypeStruct((R, D), x.dtype),
        grid=(R // tile_r,),
        in_specs=[row_D, _const_spec(g.shape), _const_spec(b.shape)],
        out_specs=row_D,
        compiler_params=_PAR1,
    )(x, g, b)


# ----------------------------------------------------------------------------
# JAX glue: rotary tables, embedding gather, layer wiring
# ----------------------------------------------------------------------------

def rotary_tables(seq_len, dim, n_head):
    inv_freq = 1.0 / (10000.0 ** (jnp.arange(0, dim, 2, dtype=jnp.float32) / dim))
    t = jnp.arange(seq_len, dtype=jnp.float32)
    freqs = jnp.einsum("i,j->ij", t, inv_freq)
    emb = jnp.concatenate([freqs, freqs], axis=-1)            # (seq_len, dim)
    cos = jnp.tile(jnp.cos(emb), (1, n_head))                 # (seq_len, n_head*dim)
    sin = jnp.tile(jnp.sin(emb), (1, n_head))
    return cos, sin


def mol_encoder_forward(params, idx, mask, cfg):
    N, L = idx.shape
    D = cfg["n_embd"]
    H = cfg["n_head"]
    Dh = D // H
    M = cfg["num_feats"]
    HM = H * M

    L_pad = _round_up(L, 8)
    R = N * L_pad
    tile_r = _pick_row_tile(R, L_pad)
    nb = _pick_seq_tile(N, L_pad, HM, D)

    # Embedding gather (XLA glue); Dropout(d_dropout) -> identity in eval mode.
    x = params["tok_emb"][idx]                                # (N, L, D)
    x = jnp.pad(x, ((0, 0), (0, L_pad - L), (0, 0)))          # pad seq once

    # LengthMask(mask.sum(-1), max_len=L): position s valid iff s < length.
    lengths = jnp.sum(mask.astype(jnp.int32), axis=-1)
    kmask = (jnp.arange(L_pad)[None, :] < lengths[:, None]).astype(jnp.float32)
    kmask_col = kmask.reshape(R, 1)

    cos_t, sin_t = rotary_tables(L_pad, Dh, H)                # (L_pad, D) each

    x2 = x.reshape(R, D).astype(jnp.float32)
    for lp in params["layers"]:
        qf, kf, v = fused_qkv_rope_featuremap(x2, lp, cos_t, sin_t,
                                              kmask_col, tile_r, L_pad)
        x3 = attn_proj_residual_ln(qf.reshape(N, L_pad, HM),
                                   kf.reshape(N, L_pad, HM),
                                   v.reshape(N, L_pad, D),
                                   x2.reshape(N, L_pad, D), lp, H, M, nb)
        x2 = ffn_residual_ln(x3.reshape(R, D), lp, tile_r)

    # final norm of the fast_transformers TransformerEncoder
    x2 = pallas_layernorm(x2, params["final_ln_g"], params["final_ln_b"], tile_r)

    x = x2.reshape(N, L_pad, D)[:, :L, :]
    token_embeddings = x * mask[..., None].astype(x.dtype)
    pad = cfg["max_len"] - L
    token_embeddings = jnp.pad(token_embeddings, ((0, 0), (0, pad), (0, 0)))
    return token_embeddings


# ----------------------------------------------------------------------------
# Deterministic synthetic parameters (module shapes) + preprocessing
# ----------------------------------------------------------------------------

def init_params(key, cfg, n_vocab):
    D = cfg["n_embd"]
    Dh = D // cfg["n_head"]
    M = cfg["num_feats"]
    F = cfg["n_embd"]                  # feed_forward_dimensions = n_embd
    keys = iter(jax.random.split(key, 16 + 16 * cfg["n_layer"]))

    def lin(i, o):
        w = 0.02 * jax.random.normal(next(keys), (i, o), jnp.float32)
        return w, jnp.zeros((o,), jnp.float32)

    params = {"tok_emb": 0.02 * jax.random.normal(next(keys), (n_vocab, D),
                                                  jnp.float32)}
    layers = []
    for _ in range(cfg["n_layer"]):
        wq, bq = lin(D, D)
        wk, bk = lin(D, D)
        wv, bv = lin(D, D)
        wo, bo = lin(D, D)
        w1, b1 = lin(D, F)
        w2, b2 = lin(F, D)
        omega = jax.random.normal(next(keys), (Dh, M), jnp.float32)
        layers.append(dict(
            wq=wq, bq=bq, wk=wk, bk=bk, wv=wv, bv=bv, wo=wo, bo=bo,
            w1=w1, b1=b1, w2=w2, b2=b2, omega=omega,
            ln1_g=jnp.ones((D,), jnp.float32), ln1_b=jnp.zeros((D,), jnp.float32),
            ln2_g=jnp.ones((D,), jnp.float32), ln2_b=jnp.zeros((D,), jnp.float32),
        ))
    params["layers"] = layers
    params["final_ln_g"] = jnp.ones((D,), jnp.float32)
    params["final_ln_b"] = jnp.zeros((D,), jnp.float32)
    return params


def prepare_params(raw, cfg):
    """Fold rotate_half into the q/k weights, fuse the 5 projections into one
    (D, 5D) matmul, block-diagonalize omega, cast matmul weights to bf16."""
    D = cfg["n_embd"]
    H = cfg["n_head"]
    Dh = D // H
    half = Dh // 2

    # signed permutation P with  q @ P == rotate_half(q)  (per head block)
    p_head = jnp.zeros((Dh, Dh), jnp.float32)
    r = jnp.arange(half)
    p_head = p_head.at[r + half, r].set(-1.0)
    p_head = p_head.at[r, r + half].set(1.0)
    P = jnp.kron(jnp.eye(H, dtype=jnp.float32), p_head)                 # (D, D)

    wdt = _MATMUL_DTYPE
    out = {"tok_emb": raw["tok_emb"],
           "final_ln_g": raw["final_ln_g"].reshape(1, D),
           "final_ln_b": raw["final_ln_b"].reshape(1, D),
           "layers": []}
    for p in raw["layers"]:
        F = p["w1"].shape[1]
        w5 = jnp.concatenate([p["wq"], p["wq"] @ P, p["wk"], p["wk"] @ P,
                              p["wv"]], axis=1)                         # (D, 5D)
        b5 = jnp.concatenate([p["bq"], p["bq"] @ P, p["bk"], p["bk"] @ P,
                              p["bv"]], axis=0).reshape(1, 5 * D)
        out["layers"].append(dict(
            w5=w5.astype(wdt), b5=b5,
            omega_bd=jnp.kron(jnp.eye(H, dtype=jnp.float32),
                              p["omega"]).astype(wdt),                  # (D, HM)
            wo=p["wo"].astype(wdt), bo=p["bo"].reshape(1, D),
            w1=p["w1"].astype(wdt), b1=p["b1"].reshape(1, F),
            w2=p["w2"].astype(wdt), b2=p["b2"].reshape(1, D),
            ln1_g=p["ln1_g"].reshape(1, D), ln1_b=p["ln1_b"].reshape(1, D),
            ln2_g=p["ln2_g"].reshape(1, D), ln2_b=p["ln2_b"].reshape(1, D),
        ))
    return out


# ----------------------------------------------------------------------------

if __name__ == "__main__":
    config = dict(n_embd=32, n_head=4, n_layer=2, num_feats=8,
                  d_dropout=0.0, max_len=16)
    n_vocab = 50

    key = jax.random.PRNGKey(0)
    k_param, k_idx = jax.random.split(key)
    raw_params = init_params(k_param, config, n_vocab)
    params = prepare_params(raw_params, config)

    N, L = 2, 8
    idx = jax.random.randint(k_idx, (N, L), 0, n_vocab, dtype=jnp.int32)
    # prefix-style padding mask (lengths 8 and 5)
    lengths = jnp.array([8, 5], dtype=jnp.int32)
    mask = (jnp.arange(L)[None, :] < lengths[:, None]).astype(jnp.int32)

    out = mol_encoder_forward(params, idx, mask, config)
    out = jax.block_until_ready(out)
    assert out.shape == (N, config["max_len"], config["n_embd"])
    assert bool(jnp.all(jnp.isfinite(out)))
    print("KERNEL_OK")
</pallas_src>

<mosaic_0001>
module attributes {stable_mosaic.version = 11 : i64} {
  func.func @k(%arg0: i32, %arg1: memref<8x128xf32, #tpu.memory_space<vmem>>, %arg2: memref<8x128xf32, #tpu.memory_space<vmem>>, %arg3: memref<8x128xf32, #tpu.memory_space<vmem>>) attributes {dimension_semantics = [#tpu.dimension_semantics<parallel>], iteration_bounds = array<i64: 2>, scalar_prefetch = 0 : i64, scratch_operands = 0 : i64, tpu.core_type = #tpu.core_type<tc>, window_params = [{transform_indices = @transform_0, window_bounds = array<i64: 8, 128>}, {pipeline_mode = #tpu.pipeline_mode<synchronous>, transform_indices = @transform_1, window_bounds = array<i64: 8, 128>}, {transform_indices = @transform_2, window_bounds = array<i64: 8, 128>}]} {
    %c0 = arith.constant 0 : index
    %c0_0 = arith.constant 0 : index
    %0 = vector.load %arg1[%c0, %c0_0] : memref<8x128xf32, #tpu.memory_space<vmem>>, vector<8x128xf32>
    %c0_1 = arith.constant 0 : index
    %c0_2 = arith.constant 0 : index
    %1 = vector.load %arg2[%c0_1, %c0_2] : memref<8x128xf32, #tpu.memory_space<vmem>>, vector<8x128xf32>
    %2 = arith.addf %0, %1 : vector<8x128xf32>
    %c0_3 = arith.constant 0 : index
    %c0_4 = arith.constant 0 : index
    %3 = vector.load %arg3[%c0_3, %c0_4] : memref<8x128xf32, #tpu.memory_space<vmem>>, vector<8x128xf32>
    tpu.vector_store %arg3[%c0_3, %c0_4], %2 {strides = array<i32>} : memref<8x128xf32, #tpu.memory_space<vmem>>, vector<8x128xf32>,
    return
  }
  func.func @transform_0(%arg0: i32) -> (i32, i32) {
    %c0_i32 = arith.constant 0 : i32
    %c0_i32_0 = arith.constant 0 : i32
    return %arg0, %c0_i32 : i32, i32
  }
  func.func @transform_1(%arg0: i32) -> (i32, i32) {
    %c0_i32 = arith.constant 0 : i32
    %c0_i32_0 = arith.constant 0 : i32
    %c0_i32_1 = arith.constant 0 : i32
    return %c0_i32, %c0_i32_0 : i32, i32
  }
  func.func @transform_2(%arg0: i32) -> (i32, i32) {
    %c0_i32 = arith.constant 0 : i32
    %c0_i32_0 = arith.constant 0 : i32
    return %arg0, %c0_i32 : i32, i32
  }
}

module attributes {stable_mosaic.version = 11 : i64} {
  func.func @_qkv_rope_feat_kernel(%arg0: i32, %arg1: memref<8x32xf32, #tpu.memory_space<vmem>>, %arg2: memref<32x160xbf16, #tpu.memory_space<vmem>>, %arg3: memref<1x160xf32, #tpu.memory_space<vmem>>, %arg4: memref<8x32xf32, #tpu.memory_space<vmem>>, %arg5: memref<8x32xf32, #tpu.memory_space<vmem>>, %arg6: memref<32x32xbf16, #tpu.memory_space<vmem>>, %arg7: memref<8x1xf32, #tpu.memory_space<vmem>>, %arg8: memref<8x32xbf16, #tpu.memory_space<vmem>>, %arg9: memref<8x32xbf16, #tpu.memory_space<vmem>>, %arg10: memref<8x32xbf16, #tpu.memory_space<vmem>>) attributes {dimension_semantics = [#tpu.dimension_semantics<parallel>], iteration_bounds = array<i64: 2>, scalar_prefetch = 0 : i64, scratch_operands = 0 : i64, tpu.core_type = #tpu.core_type<tc>, window_params = [{transform_indices = @transform_0, window_bounds = array<i64: 8, 32>}, {pipeline_mode = #tpu.pipeline_mode<synchronous>, transform_indices = @transform_1, window_bounds = array<i64: 32, 160>}, {pipeline_mode = #tpu.pipeline_mode<synchronous>, transform_indices = @transform_2, window_bounds = array<i64: 1, 160>}, {pipeline_mode = #tpu.pipeline_mode<synchronous>, transform_indices = @transform_3, window_bounds = array<i64: 8, 32>}, {pipeline_mode = #tpu.pipeline_mode<synchronous>, transform_indices = @transform_4, window_bounds = array<i64: 8, 32>}, {pipeline_mode = #tpu.pipeline_mode<synchronous>, transform_indices = @transform_5, window_bounds = array<i64: 32, 32>}, {transform_indices = @transform_6, window_bounds = array<i64: 8, 1>}, {transform_indices = @transform_7, window_bounds = array<i64: 8, 32>}, {transform_indices = @transform_8, window_bounds = array<i64: 8, 32>}, {transform_indices = @transform_9, window_bounds = array<i64: 8, 32>}]} {
    %c0 = arith.constant 0 : index
    %c0_0 = arith.constant 0 : index
    %0 = vector.load %arg1[%c0, %c0_0] : memref<8x32xf32, #tpu.memory_space<vmem>>, vector<8x32xf32>
    %1 = arith.truncf %0 : vector<8x32xf32> to vector<8x32xbf16>
    %c0_1 = arith.constant 0 : index
    %c0_2 = arith.constant 0 : index
    %2 = vector.load %arg2[%c0_1, %c0_2] : memref<32x160xbf16, #tpu.memory_space<vmem>>, vector<32x160xbf16>
    %cst = arith.constant dense<0.000000e+00> : vector<8x160xf32>
    %3 = tpu.matmul %1, %2, %cst {dimension_numbers = #tpu.dot_dimension_numbers<[1], [0], [0], [1], [0, 0, 1, 1], [], []>} : vector<8x32xbf16>, vector<32x160xbf16>, vector<8x160xf32> -> vector<8x160xf32>
    %c0_3 = arith.constant 0 : index
    %c0_4 = arith.constant 0 : index
    %4 = vector.load %arg3[%c0_3, %c0_4] : memref<1x160xf32, #tpu.memory_space<vmem>>, vector<1x160xf32>
    %5 = vector.broadcast %4 : vector<1x160xf32> to vector<8x160xf32>
    %6 = arith.addf %3, %5 : vector<8x160xf32>
    %7 = vector.extract_strided_slice %6 {offsets = [0, 0], sizes = [8, 32], strides = [1, 1]} : vector<8x160xf32> to vector<8x32xf32>
    %8 = vector.extract_strided_slice %6 {offsets = [0, 32], sizes = [8, 32], strides = [1, 1]} : vector<8x160xf32> to vector<8x32xf32>
    %9 = vector.extract_strided_slice %6 {offsets = [0, 64], sizes = [8, 32], strides = [1, 1]} : vector<8x160xf32> to vector<8x32xf32>
    %10 = vector.extract_strided_slice %6 {offsets = [0, 96], sizes = [8, 32], strides = [1, 1]} : vector<8x160xf32> to vector<8x32xf32>
    %11 = vector.extract_strided_slice %6 {offsets = [0, 128], sizes = [8, 32], strides = [1, 1]} : vector<8x160xf32> to vector<8x32xf32>
    %c0_5 = arith.constant 0 : index
    %c0_6 = arith.constant 0 : index
    %12 = vector.load %arg4[%c0_5, %c0_6] : memref<8x32xf32, #tpu.memory_space<vmem>>, vector<8x32xf32>
    %c0_7 = arith.constant 0 : index
    %c0_8 = arith.constant 0 : index
    %13 = vector.load %arg5[%c0_7, %c0_8] : memref<8x32xf32, #tpu.memory_space<vmem>>, vector<8x32xf32>
    %14 = vector.shape_cast %7 : vector<8x32xf32> to vector<1x8x32xf32>
    %15 = vector.shape_cast %12 : vector<8x32xf32> to vector<1x8x32xf32>
    %16 = arith.mulf %14, %15 : vector<1x8x32xf32>
    %17 = vector.shape_cast %8 : vector<8x32xf32> to vector<1x8x32xf32>
    %18 = vector.shape_cast %13 : vector<8x32xf32> to vector<1x8x32xf32>
    %19 = arith.mulf %17, %18 : vector<1x8x32xf32>
    %20 = arith.addf %16, %19 : vector<1x8x32xf32>
    %21 = vector.shape_cast %9 : vector<8x32xf32> to vector<1x8x32xf32>
    %22 = vector.shape_cast %12 : vector<8x32xf32> to vector<1x8x32xf32>
    %23 = arith.mulf %21, %22 : vector<1x8x32xf32>
    %24 = vector.shape_cast %10 : vector<8x32xf32> to vector<1x8x32xf32>
    %25 = vector.shape_cast %13 : vector<8x32xf32> to vector<1x8x32xf32>
    %26 = arith.mulf %24, %25 : vector<1x8x32xf32>
    %27 = arith.addf %23, %26 : vector<1x8x32xf32>
    %28 = vector.shape_cast %20 : vector<1x8x32xf32> to vector<8x32xf32>
    %29 = vector.shape_cast %27 : vector<1x8x32xf32> to vector<8x32xf32>
    %c0_9 = arith.constant 0 : index
    %c0_10 = arith.constant 0 : index
    %30 = vector.load %arg6[%c0_9, %c0_10] : memref<32x32xbf16, #tpu.memory_space<vmem>>, vector<32x32xbf16>
    %31 = arith.truncf %28 : vector<8x32xf32> to vector<8x32xbf16>
    %cst_11 = arith.constant dense<0.000000e+00> : vector<8x32xf32>
    %32 = tpu.matmul %31, %30, %cst_11 {dimension_numbers = #tpu.dot_dimension_numbers<[1], [0], [0], [1], [0, 0, 1, 1], [], []>} : vector<8x32xbf16>, vector<32x32xbf16>, vector<8x32xf32> -> vector<8x32xf32>
    %cst_12 = arith.constant 0.000000e+00 : f32
    %33 = vector.broadcast %cst_12 : f32 to vector<8x32xf32>
    %34 = arith.maximumf %32, %33 : vector<8x32xf32>
    %35 = arith.truncf %29 : vector<8x32xf32> to vector<8x32xbf16>
    %cst_13 = arith.constant dense<0.000000e+00> : vector<8x32xf32>
    %36 = tpu.matmul %35, %30, %cst_13 {dimension_numbers = #tpu.dot_dimension_numbers<[1], [0], [0], [1], [0, 0, 1, 1], [], []>} : vector<8x32xbf16>, vector<32x32xbf16>, vector<8x32xf32> -> vector<8x32xf32>
    %cst_14 = arith.constant 0.000000e+00 : f32
    %37 = vector.broadcast %cst_14 : f32 to vector<8x32xf32>
    %38 = arith.maximumf %36, %37 : vector<8x32xf32>
    %c0_15 = arith.constant 0 : index
    %c0_16 = arith.constant 0 : index
    %39 = vector.load %arg7[%c0_15, %c0_16] : memref<8x1xf32, #tpu.memory_space<vmem>>, vector<8x1xf32>
    %40 = vector.broadcast %39 : vector<8x1xf32> to vector<8x32xf32>
    %41 = arith.mulf %38, %40 : vector<8x32xf32>
    %42 = arith.truncf %34 : vector<8x32xf32> to vector<8x32xbf16>
    %c0_17 = arith.constant 0 : index
    %c0_18 = arith.constant 0 : index
    %43 = vector.load %arg8[%c0_17, %c0_18] : memref<8x32xbf16, #tpu.memory_space<vmem>>, vector<8x32xbf16>
    tpu.vector_store %arg8[%c0_17, %c0_18], %42 {strides = array<i32>} : memref<8x32xbf16, #tpu.memory_space<vmem>>, vector<8x32xbf16>,
    %44 = arith.truncf %41 : vector<8x32xf32> to vector<8x32xbf16>
    %c0_19 = arith.constant 0 : index
    %c0_20 = arith.constant 0 : index
    %45 = vector.load %arg9[%c0_19, %c0_20] : memref<8x32xbf16, #tpu.memory_space<vmem>>, vector<8x32xbf16>
    tpu.vector_store %arg9[%c0_19, %c0_20], %44 {strides = array<i32>} : memref<8x32xbf16, #tpu.memory_space<vmem>>, vector<8x32xbf16>,
    %46 = arith.truncf %11 : vector<8x32xf32> to vector<8x32xbf16>
    %c0_21 = arith.constant 0 : index
    %c0_22 = arith.constant 0 : index
    %47 = vector.load %arg10[%c0_21, %c0_22] : memref<8x32xbf16, #tpu.memory_space<vmem>>, vector<8x32xbf16>
    tpu.vector_store %arg10[%c0_21, %c0_22], %46 {strides = array<i32>} : memref<8x32xbf16, #tpu.memory_space<vmem>>, vector<8x32xbf16>,
    return
  }
  func.func @transform_0(%arg0: i32) -> (i32, i32) {
    %c0_i32 = arith.constant 0 : i32
    %c0_i32_0 = arith.constant 0 : i32
    return %arg0, %c0_i32 : i32, i32
  }
  func.func @transform_1(%arg0: i32) -> (i32, i32) {
    %c0_i32 = arith.constant 0 : i32
    %c0_i32_0 = arith.constant 0 : i32
    %c0_i32_1 = arith.constant 0 : i32
    return %c0_i32, %c0_i32_0 : i32, i32
  }
  func.func @transform_2(%arg0: i32) -> (i32, i32) {
    %c0_i32 = arith.constant 0 : i32
    %c0_i32_0 = arith.constant 0 : i32
    %c0_i32_1 = arith.constant 0 : i32
    return %c0_i32, %c0_i32_0 : i32, i32
  }
  func.func @transform_3(%arg0: i32) -> (i32, i32) {
    %c0_i32 = arith.constant 0 : i32
    %c0_i32_0 = arith.constant 0 : i32
    %c0_i32_1 = arith.constant 0 : i32
    return %c0_i32, %c0_i32_0 : i32, i32
  }
  func.func @transform_4(%arg0: i32) -> (i32, i32) {
    %c0_i32 = arith.constant 0 : i32
    %c0_i32_0 = arith.constant 0 : i32
    %c0_i32_1 = arith.constant 0 : i32
    return %c0_i32, %c0_i32_0 : i32, i32
  }
  func.func @transform_5(%arg0: i32) -> (i32, i32) {
    %c0_i32 = arith.constant 0 : i32
    %c0_i32_0 = arith.constant 0 : i32
    %c0_i32_1 = arith.constant 0 : i32
    return %c0_i32, %c0_i32_0 : i32, i32
  }
  func.func @transform_6(%arg0: i32) -> (i32, i32) {
    %c0_i32 = arith.constant 0 : i32
    %c0_i32_0 = arith.constant 0 : i32
    return %arg0, %c0_i32 : i32, i32
  }
  func.func @transform_7(%arg0: i32) -> (i32, i32) {
    %c0_i32 = arith.constant 0 : i32
    %c0_i32_0 = arith.constant 0 : i32
    return %arg0, %c0_i32 : i32, i32
  }
  func.func @transform_8(%arg0: i32) -> (i32, i32) {
    %c0_i32 = arith.constant 0 : i32
    %c0_i32_0 = arith.constant 0 : i32
    return %arg0, %c0_i32 : i32, i32
  }
  func.func @transform_9(%arg0: i32) -> (i32, i32) {
    %c0_i32 = arith.constant 0 : i32
    %c0_i32_0 = arith.constant 0 : i32
    return %arg0, %c0_i32 : i32, i32
  }
}

</mosaic_0001>

<llo_original>
// kernel: tpu_custom_call.1
$region0: #{tpu_custom_call.1}
  #allocation0 [shape = 'u32[]', space=smem, size = 0x4, offset = 0x4, fixed_abs, tag = 'smem constant byte address 0x4 - core index']
  #allocation1 [shape = 'u32[144,128]{1,0:T(1,128)}', space=vmem, size = 0x12000, scoped, tag = 'internal scratch']
  %s0 = inlined_call_operand.hbm [shape: f32[16,128], index: 0, kind: input, shape index: {}]
  %s1 = inlined_call_operand.hbm [shape: f32[8,128], index: 1, kind: input, shape index: {}]
  %s2 = inlined_call_operand.hbm [shape: f32[16,128], index: 2, kind: output, shape index: {}]
  %s3 = sld [smem:[#allocation0]]
  $region49: #{tpu_custom_call.1} parent=0
    _
  %s5 = ssub.s32 1, %s3
  %s6 = scalar_select 0, %s5, %s3
  $region1: #{tpu_custom_call.1} parent=0
    #allocation2 [shape = 'u8[8192]{0}', space=vmem, size = 0x2000, scoped, tag = 'input window, operand 0']
    #allocation3 [shape = 's32[2]{0}', space=sflag, size = 0x8, scoped, tag = 'scoped memory for tpu_custom_call.1']
    #allocation4 [shape = 's32[2]{0}', space=sflag, size = 0x8, scoped, tag = 'scoped memory for tpu_custom_call.1']
    #allocation5 [shape = 'u8[4096]{0}', space=vmem, size = 0x1000, scoped, tag = 'input window, operand 1, single buffered']
    #allocation6 [shape = 's32[1]{0}', space=sflag, size = 0x4, scoped, tag = 'scoped memory for tpu_custom_call.1']
    #allocation7 [shape = 'u8[8192]{0}', space=vmem, size = 0x2000, scoped, tag = 'output window, operand 0']
    %7 = vsyncpa [#allocation3], 0
    %s8 = scalar_lea.sflag [#allocation3], 1
    %9 = vsyncpa %s8, 0
    %10 = vsyncpa [#allocation6], 0
    %11 = vsyncpa [#allocation4], 0
    %s12 = scalar_lea.sflag [#allocation4], 1
    %13 = vsyncpa %s12, 0
    loop: start=0, step=1, limit=4
    $region2: #{tpu_custom_call.1} parent=1 // loop_pre_header
      _
    $region3: #{tpu_custom_call.1} parent=1 // loop_header
      %s15 = sphi 0, %s19
      %p16 = scmp.ge.s32.totalorder %s15, 4
      %s25 = sphi 0, %s27
      %s28 = sphi 0, %s25
      %s29 = sphi 0, %s28
      %s45 = sphi 0, %s29
      %s49 = sphi 0, %s49
      %s51 = sphi 0, %s49
      %s52 = sphi 0, %s51
      %s66 = sphi 0, %s52
      %s72 = sphi 0, %s74
      %s75 = sphi 0, %s72
      %s76 = sphi 0, %s75
      %s92 = sphi 0, %s76
    $region4: #{tpu_custom_call.1} parent=1 // loop_header_branch
      %18 = sbr.rel (%p16) target = $region8
    $region5: #{tpu_custom_call.1} parent=1 // loop_body
      %s20 = ssub.s32 %s15, 1
      %s21 = ssub.s32 %s15, 2
      %s22 = sadd.s32 %s15, 1
      %s23 = ssub.s32 %s15, %s22
      %p24 = scmp.eq.s32.totalorder %s23, 0
      %s26 = sadd.s32 %s25, 1
      %s27 = scalar_select %p24, %s25, %s26
      %p30 = pneg %p24
      %p31 = scmp.eq.s32.totalorder %s15, 1
      %p32 = por %p30, %p31
      %p33 = scmp.ne.s32.totalorder %s25, %s28
      %p34 = scmp.eq.s32.totalorder %s15, 0
      %p35 = por %p33, %p34
      %p36 = scmp.ne.s32.totalorder %s25, %s28
      %p37 = scmp.eq.s32.totalorder %s20, 1
      %p38 = por %p36, %p37
      %p39 = scmp.ne.s32.totalorder %s28, %s29
      %p40 = scmp.eq.s32.totalorder %s20, 0
      %p41 = por %p39, %p40
      %p42 = scmp.ne.s32.totalorder %s28, %s29
      %p43 = scmp.eq.s32.totalorder %s21, 1
      %p44 = por %p42, %p43
      %p46 = scmp.ne.s32.totalorder %s29, %s45
      %p47 = scmp.eq.s32.totalorder %s21, 0
      %p48 = por %p46, %p47
      %s50 = sadd.s32 %s49, 1
      %p53 = scmp.eq.s32.totalorder %s15, 1
      %p54 = scmp.ne.s32.totalorder %s49, %s51
      %p55 = scmp.eq.s32.totalorder %s15, 0
      %p56 = por %p54, %p55
      %p57 = scmp.ne.s32.totalorder %s49, %s51
      %p58 = scmp.eq.s32.totalorder %s20, 1
      %p59 = por %p57, %p58
      %p60 = scmp.ne.s32.totalorder %s51, %s52
      %p61 = scmp.eq.s32.totalorder %s20, 0
      %p62 = por %p60, %p61
      %p63 = scmp.ne.s32.totalorder %s51, %s52
      %p64 = scmp.eq.s32.totalorder %s21, 1
      %p65 = por %p63, %p64
      %p67 = scmp.ne.s32.totalorder %s52, %s66
      %p68 = scmp.eq.s32.totalorder %s21, 0
      %p69 = por %p67, %p68
      %s70 = ssub.s32 %s15, %s22
      %p71 = scmp.eq.s32.totalorder %s70, 0
      %s73 = sadd.s32 %s72, 1
      %s74 = scalar_select %p71, %s72, %s73
      %p77 = pneg %p71
      %p78 = scmp.eq.s32.totalorder %s15, 1
      %p79 = por %p77, %p78
      %p80 = scmp.ne.s32.totalorder %s72, %s75
      %p81 = scmp.eq.s32.totalorder %s15, 0
      %p82 = por %p80, %p81
      %p83 = scmp.ne.s32.totalorder %s72, %s75
      %p84 = scmp.eq.s32.totalorder %s20, 1
      %p85 = por %p83, %p84
      %p86 = scmp.ne.s32.totalorder %s75, %s76
      %p87 = scmp.eq.s32.totalorder %s20, 0
      %p88 = por %p86, %p87
      %p89 = scmp.ne.s32.totalorder %s75, %s76
      %p90 = scmp.eq.s32.totalorder %s21, 1
      %p91 = por %p89, %p90
      %p93 = scmp.ne.s32.totalorder %s76, %s92
      %p94 = scmp.eq.s32.totalorder %s21, 0
      %p95 = por %p93, %p94
      %p96 = scmp.le.s32.totalorder 1, %s15
      %p97 = scmp.lt.s32.totalorder %s15, 3
      %p98 = pnand %p96, %p97
      %p99 = pneg %p98
      // Predicated region
      $region9: #{tpu_custom_call.1} parent=5 // pred_check
        _
      $region10: #{tpu_custom_call.1} parent=5 // pred_check_branch
        %101 = sbr.rel (%p98) target = $region12
      $region11: #{tpu_custom_call.1} parent=5 // pred_region
        %s102 = ssub.s32 %s15, 1
        // Predicated region
        $region13: #{tpu_custom_call.1} parent=11 // pred_check
          %p103 = pneg %p62
        $region14: #{tpu_custom_call.1} parent=11 // pred_check_branch
          %105 = sbr.rel (%p103) target = $region16
        $region15: #{tpu_custom_call.1} parent=11 // pred_region
          %s107 = ssub.s32 128, 128
          %108 = vsyncadd [#allocation6], %s107
          %s110 = sshll.u32 [#allocation5], 4
          %s111 = int_to_ptr.vmem [resolvable:$true] %s110
          %113 = dma.hbm_to_vmem [thread:$0]  %s1, 128, %s111, [#allocation6]
        $region16: #{tpu_custom_call.1} parent=11 // pred_fallthru
          _
      $region12: #{tpu_custom_call.1} parent=5 // pred_fallthru
        _
      %p114 = scmp.lt.s32.totalorder %s15, 2
      // Predicated region
      $region17: #{tpu_custom_call.1} parent=5 // pred_check
        %p115 = pneg %p114
      $region18: #{tpu_custom_call.1} parent=5 // pred_check_branch
        %117 = sbr.rel (%p115) target = $region20
      $region19: #{tpu_custom_call.1} parent=5 // pred_region
        // Predicated region
        $region21: #{tpu_custom_call.1} parent=19 // pred_check
          %p118 = pneg %p35
        $region22: #{tpu_custom_call.1} parent=19 // pred_check_branch
          %120 = sbr.rel (%p118) target = $region24
        $region23: #{tpu_custom_call.1} parent=19 // pred_region
          %s121 = sand.u32 %s25, 1
          %s122 = scalar_lea.sflag [#allocation3], %s121
          %s123 = sand.u32 %s25, 1
          %s124 = smul.addr %s123, 8
          %s125 = scalar_lea.vmem [#allocation2], %s124
          %s127 = ssub.s32 128, 128
          %128 = vsyncadd %s122, %s127
          %s129 = smul.addr %s15, 128
          %s130 = scalar_lea.hbm %s0, %s129
          %s132 = sshll.u32 %s125, 4
          %s133 = int_to_ptr.vmem [resolvable:$true] %s132
          %135 = dma.hbm_to_vmem [thread:$0]  %s130, 128, %s133, %s122
        $region24: #{tpu_custom_call.1} parent=19 // pred_fallthru
          _
      $region20: #{tpu_custom_call.1} parent=5 // pred_fallthru
        _
      %p136 = scmp.le.s32.totalorder 1, %s15
      %p137 = scmp.lt.s32.totalorder %s15, 3
      %p138 = pnand %p136, %p137
      %p139 = pneg %p138
      // Predicated region
      $region25: #{tpu_custom_call.1} parent=5 // pred_check
        _
      $region26: #{tpu_custom_call.1} parent=5 // pred_check_branch
        %141 = sbr.rel (%p138) target = $region28
      $region27: #{tpu_custom_call.1} parent=5 // pred_region
        %s142 = ssub.s32 %s15, 1
        %s143 = sand.u32 %s28, 1
        %s144 = scalar_lea.sflag [#allocation3], %s143
        %s145 = sand.u32 %s28, 1
        %s146 = smul.addr %s145, 8
        %s147 = scalar_lea.vmem [#allocation2], %s146
        // Predicated region
        $region29: #{tpu_custom_call.1} parent=27 // pred_check
          %p148 = pneg %p41
        $region30: #{tpu_custom_call.1} parent=27 // pred_check_branch
          %150 = sbr.rel (%p148) target = $region32
        $region31: #{tpu_custom_call.1} parent=27 // pred_region
          %151 = dma.done %s144, 128
        $region32: #{tpu_custom_call.1} parent=27 // pred_fallthru
          _
        // Predicated region
        $region33: #{tpu_custom_call.1} parent=27 // pred_check
          %p152 = pneg %p62
        $region34: #{tpu_custom_call.1} parent=27 // pred_check_branch
          %154 = sbr.rel (%p152) target = $region36
        $region35: #{tpu_custom_call.1} parent=27 // pred_region
          %155 = dma.done [#allocation6], 128
        $region36: #{tpu_custom_call.1} parent=27 // pred_fallthru
          _
        %s156 = sand.u32 %s28, 1
        %s157 = scalar_lea.sflag [#allocation3], %s156
        %s158 = sand.u32 %s28, 1
        %s159 = smul.addr %s158, 8
        %s160 = scalar_lea.vmem [#allocation2], %s159
        %p161 = pneg %p41
        %p162 = pneg %p38
        %p163 = pneg %p62
        %p164 = pneg %p59
        %p165 = pneg %p88
        %p166 = pneg %p85
        %s167 = sand.u32 %s75, 1
        %s168 = scalar_lea.sflag [#allocation4], %s167
        %s169 = sand.u32 %s75, 1
        %s170 = smul.addr %s169, 8
        %s171 = scalar_lea.vmem [#allocation7], %s170
        %v172 = vld [vmem:[%s147] sm:$0xff]
        %v173 = vld [vmem:[#allocation5] sm:$0xff]
        %v174 = vadd.f32 %v172, %v173
        %175 = vst [vmem:[%s171] sm:$0xff] %v174
        %s176 = sand.u32 %s75, 1
        %s177 = scalar_lea.sflag [#allocation4], %s176
        %s178 = sand.u32 %s75, 1
        %s179 = smul.addr %s178, 8
        %s180 = scalar_lea.vmem [#allocation7], %s179
        // Predicated region
        $region37: #{tpu_custom_call.1} parent=27 // pred_check
          %p181 = pneg %p85
        $region38: #{tpu_custom_call.1} parent=27 // pred_check_branch
          %183 = sbr.rel (%p181) target = $region40
        $region39: #{tpu_custom_call.1} parent=27 // pred_region
          %s185 = ssub.s32 128, 128
          %186 = vsyncadd %s177, %s185
          %s187 = smul.addr %s20, 128
          %s188 = scalar_lea.hbm %s2, %s187
          %s190 = sshll.u32 %s180, 4
          %s191 = int_to_ptr.vmem [resolvable:$true] %s190
          %193 = dma.vmem_to_hbm [thread:$0]  %s191, 128, %s188, %s177
        $region40: #{tpu_custom_call.1} parent=27 // pred_fallthru
          _
      $region28: #{tpu_custom_call.1} parent=5 // pred_fallthru
        _
      %p194 = scmp.le.s32.totalorder 2, %s15
      // Predicated region
      $region41: #{tpu_custom_call.1} parent=5 // pred_check
        %p195 = pneg %p194
      $region42: #{tpu_custom_call.1} parent=5 // pred_check_branch
        %197 = sbr.rel (%p195) target = $region44
      $region43: #{tpu_custom_call.1} parent=5 // pred_region
        %s198 = ssub.s32 %s15, 2
        // Predicated region
        $region45: #{tpu_custom_call.1} parent=43 // pred_check
          %p199 = pneg %p91
        $region46: #{tpu_custom_call.1} parent=43 // pred_check_branch
          %201 = sbr.rel (%p199) target = $region48
        $region47: #{tpu_custom_call.1} parent=43 // pred_region
          %s202 = sand.u32 %s76, 1
          %s203 = scalar_lea.sflag [#allocation4], %s202
          %s204 = sand.u32 %s76, 1
          %s205 = smul.addr %s204, 8
          %s206 = scalar_lea.vmem [#allocation7], %s205
          %207 = dma.done %s203, 128
        $region48: #{tpu_custom_call.1} parent=43 // pred_fallthru
          _
      $region44: #{tpu_custom_call.1} parent=5 // pred_fallthru
        _
    $region6: #{tpu_custom_call.1} parent=1 // loop_footer
      %s19 = sadd.s32 1, %s15
    $region7: #{tpu_custom_call.1} parent=1 // loop_footer_branch
      %14 = sbr.rel target = $region3
    $region8: #{tpu_custom_call.1} parent=1 // loop_exit
      _
    %208 = vsyncpa [#allocation3], 1
    %s209 = scalar_lea.sflag [#allocation3], 1
    %210 = vsyncpa %s209, 1
    %211 = vsyncpa [#allocation6], 1
    %212 = vsyncpa [#allocation4], 1
    %s213 = scalar_lea.sflag [#allocation4], 1
    %214 = vsyncpa %s213, 1

// kernel: tpu_custom_call.1
$region0: #{tpu_custom_call.1}
  #allocation0 [shape = 'u32[]', space=smem, size = 0x4, offset = 0x4, fixed_abs, tag = 'smem constant byte address 0x4 - core index']
  #allocation1 [shape = 'u32[144,128]{1,0:T(1,128)}', space=vmem, size = 0x12000, scoped, tag = 'internal scratch']
  %s0 = inlined_call_operand.vmem [shape: f32[16,32], index: 0, kind: input, shape index: {}]
  %s1 = inlined_call_operand.hbm [shape: bf16[32,160], index: 1, kind: input, shape index: {}]
  %s2 = inlined_call_operand.hbm [shape: f32[1,160], index: 2, kind: input, shape index: {}]
  %s3 = inlined_call_operand.hbm [shape: f32[8,32], index: 3, kind: input, shape index: {}]
  %s4 = inlined_call_operand.hbm [shape: f32[8,32], index: 4, kind: input, shape index: {}]
  %s5 = inlined_call_operand.vmem [shape: bf16[32,32], index: 5, kind: input, shape index: {}]
  %s6 = inlined_call_operand.vmem [shape: f32[16,1], index: 6, kind: input, shape index: {}]
  %s7 = inlined_call_operand.hbm [shape: bf16[16,32], index: 7, kind: output, shape index: {0}]
  %s8 = inlined_call_operand.hbm [shape: bf16[16,32], index: 8, kind: output, shape index: {1}]
  %s9 = inlined_call_operand.hbm [shape: bf16[16,32], index: 9, kind: output, shape index: {2}]
  %10 = xla_tuple %s7, %s8, %s9
  %s11 = sld [smem:[#allocation0]]
  $region93: #{tpu_custom_call.1} parent=0
    _
  %s13 = ssub.s32 1, %s11
  %s14 = scalar_select 0, %s13, %s11
  $region1: #{tpu_custom_call.1} parent=0
    #allocation2 [shape = 'u8[16384]{0}', space=vmem, size = 0x4000, scoped, tag = 'input window, operand 1, single buffered']
    #allocation3 [shape = 's32[2]{0}', space=sflag, size = 0x8, scoped, tag = 'scoped memory for tpu_custom_call.1']
    #allocation4 [shape = 's32[2]{0}', space=sflag, size = 0x8, scoped, tag = 'scoped memory for tpu_custom_call.1']
    #allocation5 [shape = 'u8[1024]{0}', space=vmem, size = 0x400, scoped, tag = 'input window, operand 2, single buffered']
    #allocation6 [shape = 's32[1]{0}', space=sflag, size = 0x4, scoped, tag = 'scoped memory for tpu_custom_call.1']
    #allocation7 [shape = 'u8[4096]{0}', space=vmem, size = 0x1000, scoped, tag = 'input window, operand 3, single buffered']
    #allocation8 [shape = 'u8[4096]{0}', space=vmem, size = 0x1000, scoped, tag = 'input window, operand 4, single buffered']
    #allocation9 [shape = 's32[1]{0}', space=sflag, size = 0x4, scoped, tag = 'scoped memory for tpu_custom_call.1']
    #allocation10 [shape = 'u8[4096]{0}', space=vmem, size = 0x1000, scoped, tag = 'output window, operand 0']
    #allocation11 [shape = 'u8[4096]{0}', space=vmem, size = 0x1000, scoped, tag = 'output window, operand 1']
    #allocation12 [shape = 's32[2]{0}', space=sflag, size = 0x8, scoped, tag = 'scoped memory for tpu_custom_call.1']
    #allocation13 [shape = 'u8[4096]{0}', space=vmem, size = 0x1000, scoped, tag = 'output window, operand 2']
    %15 = vsyncpa [#allocation3], 0
    %16 = vsyncpa [#allocation6], 0
    %17 = vsyncpa [#allocation9], 0
    %18 = vsyncpa [#allocation4], 0
    %s19 = scalar_lea.sflag [#allocation4], 1
    %20 = vsyncpa %s19, 0
    %21 = vsyncpa [#allocation12], 0
    %s22 = scalar_lea.sflag [#allocation12], 1
    %23 = vsyncpa %s22, 0
    loop: start=0, step=1, limit=4
    $region2: #{tpu_custom_call.1} parent=1 // loop_pre_header
      _
    $region3: #{tpu_custom_call.1} parent=1 // loop_header
      %s25 = sphi 0, %s29
      %p26 = scmp.ge.s32.totalorder %s25, 4
      %s35 = sphi 0, %s37
      %s38 = sphi 0, %s35
      %s39 = sphi 0, %s38
      %s55 = sphi 0, %s39
      %s59 = sphi 0, %s59
      %s61 = sphi 0, %s59
      %s62 = sphi 0, %s61
      %s76 = sphi 0, %s62
      %s80 = sphi 0, %s80
      %s82 = sphi 0, %s80
      %s83 = sphi 0, %s82
      %s97 = sphi 0, %s83
      %s101 = sphi 0, %s101
      %s103 = sphi 0, %s101
      %s104 = sphi 0, %s103
      %s118 = sphi 0, %s104
      %s122 = sphi 0, %s122
      %s124 = sphi 0, %s122
      %s125 = sphi 0, %s124
      %s139 = sphi 0, %s125
      %s143 = sphi 0, %s143
      %s145 = sphi 0, %s143
      %s146 = sphi 0, %s145
      %s160 = sphi 0, %s146
      %s166 = sphi 0, %s168
      %s169 = sphi 0, %s166
      %s170 = sphi 0, %s169
      %s186 = sphi 0, %s170
      %s192 = sphi 0, %s194
      %s195 = sphi 0, %s192
      %s196 = sphi 0, %s195
      %s212 = sphi 0, %s196
      %s218 = sphi 0, %s220
      %s221 = sphi 0, %s218
      %s222 = sphi 0, %s221
      %s238 = sphi 0, %s222
      %s244 = sphi 0, %s246
      %s247 = sphi 0, %s244
      %s248 = sphi 0, %s247
      %s264 = sphi 0, %s248
    $region4: #{tpu_custom_call.1} parent=1 // loop_header_branch
      %28 = sbr.rel (%p26) target = $region8
    $region5: #{tpu_custom_call.1} parent=1 // loop_body
      %s30 = ssub.s32 %s25, 1
      %s31 = ssub.s32 %s25, 2
      %s32 = sadd.s32 %s25, 1
      %s33 = ssub.s32 %s25, %s32
      %p34 = scmp.eq.s32.totalorder %s33, 0
      %s36 = sadd.s32 %s35, 1
      %s37 = scalar_select %p34, %s35, %s36
      %p40 = pneg %p34
      %p41 = scmp.eq.s32.totalorder %s25, 1
      %p42 = por %p40, %p41
      %p43 = scmp.ne.s32.totalorder %s35, %s38
      %p44 = scmp.eq.s32.totalorder %s25, 0
      %p45 = por %p43, %p44
      %p46 = scmp.ne.s32.totalorder %s35, %s38
      %p47 = scmp.eq.s32.totalorder %s30, 1
      %p48 = por %p46, %p47
      %p49 = scmp.ne.s32.totalorder %s38, %s39
      %p50 = scmp.eq.s32.totalorder %s30, 0
      %p51 = por %p49, %p50
      %p52 = scmp.ne.s32.totalorder %s38, %s39
      %p53 = scmp.eq.s32.totalorder %s31, 1
      %p54 = por %p52, %p53
      %p56 = scmp.ne.s32.totalorder %s39, %s55
      %p57 = scmp.eq.s32.totalorder %s31, 0
      %p58 = por %p56, %p57
      %s60 = sadd.s32 %s59, 1
      %p63 = scmp.eq.s32.totalorder %s25, 1
      %p64 = scmp.ne.s32.totalorder %s59, %s61
      %p65 = scmp.eq.s32.totalorder %s25, 0
      %p66 = por %p64, %p65
      %p67 = scmp.ne.s32.totalorder %s59, %s61
      %p68 = scmp.eq.s32.totalorder %s30, 1
      %p69 = por %p67, %p68
      %p70 = scmp.ne.s32.totalorder %s61, %s62
      %p71 = scmp.eq.s32.totalorder %s30, 0
      %p72 = por %p70, %p71
      %p73 = scmp.ne.s32.totalorder %s61, %s62
      %p74 = scmp.eq.s32.totalorder %s31, 1
      %p75 = por %p73, %p74
      %p77 = scmp.ne.s32.totalorder %s62, %s76
      %p78 = scmp.eq.s32.totalorder %s31, 0
      %p79 = por %p77, %p78
      %s81 = sadd.s32 %s80, 1
      %p84 = scmp.eq.s32.totalorder %s25, 1
      %p85 = scmp.ne.s32.totalorder %s80, %s82
      %p86 = scmp.eq.s32.totalorder %s25, 0
      %p87 = por %p85, %p86
      %p88 = scmp.ne.s32.totalorder %s80, %s82
      %p89 = scmp.eq.s32.totalorder %s30, 1
      %p90 = por %p88, %p89
      %p91 = scmp.ne.s32.totalorder %s82, %s83
      %p92 = scmp.eq.s32.totalorder %s30, 0
      %p93 = por %p91, %p92
      %p94 = scmp.ne.s32.totalorder %s82, %s83
      %p95 = scmp.eq.s32.totalorder %s31, 1
      %p96 = por %p94, %p95
      %p98 = scmp.ne.s32.totalorder %s83, %s97
      %p99 = scmp.eq.s32.totalorder %s31, 0
      %p100 = por %p98, %p99
      %s102 = sadd.s32 %s101, 1
      %p105 = scmp.eq.s32.totalorder %s25, 1
      %p106 = scmp.ne.s32.totalorder %s101, %s103
      %p107 = scmp.eq.s32.totalorder %s25, 0
      %p108 = por %p106, %p107
      %p109 = scmp.ne.s32.totalorder %s101, %s103
      %p110 = scmp.eq.s32.totalorder %s30, 1
      %p111 = por %p109, %p110
      %p112 = scmp.ne.s32.totalorder %s103, %s104
      %p113 = scmp.eq.s32.totalorder %s30, 0
      %p114 = por %p112, %p113
      %p115 = scmp.ne.s32.totalorder %s103, %s104
      %p116 = scmp.eq.s32.totalorder %s31, 1
      %p117 = por %p115, %p116
      %p119 = scmp.ne.s32.totalorder %s104, %s118
      %p120 = scmp.eq.s32.totalorder %s31, 0
      %p121 = por %p119, %p120
      %s123 = sadd.s32 %s122, 1
      %p126 = scmp.eq.s32.totalorder %s25, 1
      %p127 = scmp.ne.s32.totalorder %s122, %s124
      %p128 = scmp.eq.s32.totalorder %s25, 0
      %p129 = por %p127, %p128
      %p130 = scmp.ne.s32.totalorder %s122, %s124
      %p131 = scmp.eq.s32.totalorder %s30, 1
      %p132 = por %p130, %p131
      %p133 = scmp.ne.s32.totalorder %s124, %s125
      %p134 = scmp.eq.s32.totalorder %s30, 0
      %p135 = por %p133, %p134
      %p136 = scmp.ne.s32.totalorder %s124, %s125
      %p137 = scmp.eq.s32.totalorder %s31, 1
      %p138 = por %p136, %p137
      %p140 = scmp.ne.s32.totalorder %s125, %s139
      %p141 = scmp.eq.s32.totalorder %s31, 0
      %p142 = por %p140, %p141
      %s144 = sadd.s32 %s143, 1
      %p147 = scmp.eq.s32.totalorder %s25, 1
      %p148 = scmp.ne.s32.totalorder %s143, %s145
      %p149 = scmp.eq.s32.totalorder %s25, 0
      %p150 = por %p148, %p149
      %p151 = scmp.ne.s32.totalorder %s143, %s145
      %p152 = scmp.eq.s32.totalorder %s30, 1
      %p153 = por %p151, %p152
      %p154 = scmp.ne.s32.totalorder %s145, %s146
      %p155 = scmp.eq.s32.totalorder %s30, 0
      %p156 = por %p154, %p155
      %p157 = scmp.ne.s32.totalorder %s145, %s146
      %p158 = scmp.eq.s32.totalorder %s31, 1
      %p159 = por %p157, %p158
      %p161 = scmp.ne.s32.totalorder %s146, %s160
      %p162 = scmp.eq.s32.totalorder %s31, 0
      %p163 = por %p161, %p162
      %s164 = ssub.s32 %s25, %s32
      %p165 = scmp.eq.s32.totalorder %s164, 0
      %s167 = sadd.s32 %s166, 1
      %s168 = scalar_select %p165, %s166, %s167
      %p171 = pneg %p165
      %p172 = scmp.eq.s32.totalorder %s25, 1
      %p173 = por %p171, %p172
      %p174 = scmp.ne.s32.totalorder %s166, %s169
      %p175 = scmp.eq.s32.totalorder %s25, 0
      %p176 = por %p174, %p175
      %p177 = scmp.ne.s32.totalorder %s166, %s169
      %p178 = scmp.eq.s32.totalorder %s30, 1
      %p179 = por %p177, %p178
      %p180 = scmp.ne.s32.totalorder %s169, %s170
      %p181 = scmp.eq.s32.totalorder %s30, 0
      %p182 = por %p180, %p181
      %p183 = scmp.ne.s32.totalorder %s169, %s170
      %p184 = scmp.eq.s32.totalorder %s31, 1
      %p185 = por %p183, %p184
      %p187 = scmp.ne.s32.totalorder %s170, %s186
      %p188 = scmp.eq.s32.totalorder %s31, 0
      %p189 = por %p187, %p188
      %s190 = ssub.s32 %s25, %s32
      %p191 = scmp.eq.s32.totalorder %s190, 0
      %s193 = sadd.s32 %s192, 1
      %s194 = scalar_select %p191, %s192, %s193
      %p197 = pneg %p191
      %p198 = scmp.eq.s32.totalorder %s25, 1
      %p199 = por %p197, %p198
      %p200 = scmp.ne.s32.totalorder %s192, %s195
      %p201 = scmp.eq.s32.totalorder %s25, 0
      %p202 = por %p200, %p201
      %p203 = scmp.ne.s32.totalorder %s192, %s195
      %p204 = scmp.eq.s32.totalorder %s30, 1
      %p205 = por %p203, %p204
      %p206 = scmp.ne.s32.totalorder %s195, %s196
      %p207 = scmp.eq.s32.totalorder %s30, 0
      %p208 = por %p206, %p207
      %p209 = scmp.ne.s32.totalorder %s195, %s196
      %p210 = scmp.eq.s32.totalorder %s31, 1
      %p211 = por %p209, %p210
      %p213 = scmp.ne.s32.totalorder %s196, %s212
      %p214 = scmp.eq.s32.totalorder %s31, 0
      %p215 = por %p213, %p214
      %s216 = ssub.s32 %s25, %s32
      %p217 = scmp.eq.s32.totalorder %s216, 0
      %s219 = sadd.s32 %s218, 1
      %s220 = scalar_select %p217, %s218, %s219
      %p223 = pneg %p217
      %p224 = scmp.eq.s32.totalorder %s25, 1
      %p225 = por %p223, %p224
      %p226 = scmp.ne.s32.totalorder %s218, %s221
      %p227 = scmp.eq.s32.totalorder %s25, 0
      %p228 = por %p226, %p227
      %p229 = scmp.ne.s32.totalorder %s218, %s221
      %p230 = scmp.eq.s32.totalorder %s30, 1
      %p231 = por %p229, %p230
      %p232 = scmp.ne.s32.totalorder %s221, %s222
      %p233 = scmp.eq.s32.totalorder %s30, 0
      %p234 = por %p232, %p233
      %p235 = scmp.ne.s32.totalorder %s221, %s222
      %p236 = scmp.eq.s32.totalorder %s31, 1
      %p237 = por %p235, %p236
      %p239 = scmp.ne.s32.totalorder %s222, %s238
      %p240 = scmp.eq.s32.totalorder %s31, 0
      %p241 = por %p239, %p240
      %s242 = ssub.s32 %s25, %s32
      %p243 = scmp.eq.s32.totalorder %s242, 0
      %s245 = sadd.s32 %s244, 1
      %s246 = scalar_select %p243, %s244, %s245
      %p249 = pneg %p243
      %p250 = scmp.eq.s32.totalorder %s25, 1
      %p251 = por %p249, %p250
      %p252 = scmp.ne.s32.totalorder %s244, %s247
      %p253 = scmp.eq.s32.totalorder %s25, 0
      %p254 = por %p252, %p253
      %p255 = scmp.ne.s32.totalorder %s244, %s247
      %p256 = scmp.eq.s32.totalorder %s30, 1
      %p257 = por %p255, %p256
      %p258 = scmp.ne.s32.totalorder %s247, %s248
      %p259 = scmp.eq.s32.totalorder %s30, 0
      %p260 = por %p258, %p259
      %p261 = scmp.ne.s32.totalorder %s247, %s248
      %p262 = scmp.eq.s32.totalorder %s31, 1
      %p263 = por %p261, %p262
      %p265 = scmp.ne.s32.totalorder %s248, %s264
      %p266 = scmp.eq.s32.totalorder %s31, 0
      %p267 = por %p265, %p266
      %p268 = scmp.le.s32.totalorder 1, %s25
      %p269 = scmp.lt.s32.totalorder %s25, 3
      %p270 = pnand %p268, %p269
      %p271 = pneg %p270
      // Predicated region
      $region9: #{tpu_custom_call.1} parent=5 // pred_check
        _
      $region10: #{tpu_custom_call.1} parent=5 // pred_check_branch
        %273 = sbr.rel (%p270) target = $region12
      $region11: #{tpu_custom_call.1} parent=5 // pred_region
        %s274 = ssub.s32 %s25, 1
        // Predicated region
        $region13: #{tpu_custom_call.1} parent=11 // pred_check
          %p275 = pneg %p72
        $region14: #{tpu_custom_call.1} parent=11 // pred_check_branch
          %277 = sbr.rel (%p275) target = $region16
        $region15: #{tpu_custom_call.1} parent=11 // pred_region
          %s279 = ssub.s32 512, 512
          %280 = vsyncadd [#allocation3], %s279
          %s281 = sshll.u32 [#allocation2], 4
          %s282 = int_to_ptr.vmem [resolvable:$true] %s281
          %287 = dma.hbm_to_vmem [thread:$0]  %s1, 512, %s282, [#allocation3], 128, 128, 8
        $region16: #{tpu_custom_call.1} parent=11 // pred_fallthru
          _
        // Predicated region
        $region17: #{tpu_custom_call.1} parent=11 // pred_check
          %p288 = pneg %p93
        $region18: #{tpu_custom_call.1} parent=11 // pred_check_branch
          %290 = sbr.rel (%p288) target = $region20
        $region19: #{tpu_custom_call.1} parent=11 // pred_region
          %s292 = ssub.s32 32, 32
          %293 = vsyncadd [#allocation6], %s292
          %s295 = sshll.u32 [#allocation5], 4
          %s296 = int_to_ptr.vmem [resolvable:$true] %s295
          %298 = dma.hbm_to_vmem [thread:$0]  %s2, 32, %s296, [#allocation6]
        $region20: #{tpu_custom_call.1} parent=11 // pred_fallthru
          _
        // Predicated region
        $region21: #{tpu_custom_call.1} parent=11 // pred_check
          %p299 = pneg %p114
        $region22: #{tpu_custom_call.1} parent=11 // pred_check_branch
          %301 = sbr.rel (%p299) target = $region24
        $region23: #{tpu_custom_call.1} parent=11 // pred_region
          %s303 = ssub.s32 128, 128
          %304 = vsyncadd [#allocation6], %s303
          %s306 = sshll.u32 [#allocation7], 4
          %s307 = int_to_ptr.vmem [resolvable:$true] %s306
          %309 = dma.hbm_to_vmem [thread:$0]  %s3, 128, %s307, [#allocation6]
        $region24: #{tpu_custom_call.1} parent=11 // pred_fallthru
          _
        // Predicated region
        $region25: #{tpu_custom_call.1} parent=11 // pred_check
          %p310 = pneg %p135
        $region26: #{tpu_custom_call.1} parent=11 // pred_check_branch
          %312 = sbr.rel (%p310) target = $region28
        $region27: #{tpu_custom_call.1} parent=11 // pred_region
          %s314 = ssub.s32 128, 128
          %315 = vsyncadd [#allocation9], %s314
          %s317 = sshll.u32 [#allocation8], 4
          %s318 = int_to_ptr.vmem [resolvable:$true] %s317
          %320 = dma.hbm_to_vmem [thread:$0]  %s4, 128, %s318, [#allocation9]
        $region28: #{tpu_custom_call.1} parent=11 // pred_fallthru
          _
        // Predicated region
        $region29: #{tpu_custom_call.1} parent=11 // pred_check
          %p321 = pneg %p156
        $region30: #{tpu_custom_call.1} parent=11 // pred_check_branch
          %323 = sbr.rel (%p321) target = $region32
        $region31: #{tpu_custom_call.1} parent=11 // pred_region
          _
        $region32: #{tpu_custom_call.1} parent=11 // pred_fallthru
          _
      $region12: #{tpu_custom_call.1} parent=5 // pred_fallthru
        _
      %p324 = scmp.lt.s32.totalorder %s25, 2
      // Predicated region
      $region33: #{tpu_custom_call.1} parent=5 // pred_check
        %p325 = pneg %p324
      $region34: #{tpu_custom_call.1} parent=5 // pred_check_branch
        %327 = sbr.rel (%p325) target = $region36
      $region35: #{tpu_custom_call.1} parent=5 // pred_region
        // Predicated region
        $region37: #{tpu_custom_call.1} parent=35 // pred_check
          %p328 = pneg %p45
        $region38: #{tpu_custom_call.1} parent=35 // pred_check_branch
          %330 = sbr.rel (%p328) target = $region40
        $region39: #{tpu_custom_call.1} parent=35 // pred_region
          %p331 = scmp.lt.s32.totalorder %s25, 1
          %s332 = scalar_select %p331, %s25, 1
          %s333 = smul.addr %s332, 8
          %s334 = scalar_lea.vmem %s0, %s333
        $region40: #{tpu_custom_call.1} parent=35 // pred_fallthru
          _
        // Predicated region
        $region41: #{tpu_custom_call.1} parent=35 // pred_check
          %p335 = pneg %p176
        $region42: #{tpu_custom_call.1} parent=35 // pred_check_branch
          %337 = sbr.rel (%p335) target = $region44
        $region43: #{tpu_custom_call.1} parent=35 // pred_region
          %p338 = scmp.lt.s32.totalorder %s25, 1
          %s339 = scalar_select %p338, %s25, 1
          %s340 = smul.addr %s339, 8
          %s341 = scalar_lea.vmem %s6, %s340
        $region44: #{tpu_custom_call.1} parent=35 // pred_fallthru
          _
      $region36: #{tpu_custom_call.1} parent=5 // pred_fallthru
        _
      %p342 = scmp.le.s32.totalorder 1, %s25
      %p343 = scmp.lt.s32.totalorder %s25, 3
      %p344 = pnand %p342, %p343
      %p345 = pneg %p344
      // Predicated region
      $region45: #{tpu_custom_call.1} parent=5 // pred_check
        _
      $region46: #{tpu_custom_call.1} parent=5 // pred_check_branch
        %347 = sbr.rel (%p344) target = $region48
      $region47: #{tpu_custom_call.1} parent=5 // pred_region
        %s348 = ssub.s32 %s25, 1
        // Predicated region
        $region49: #{tpu_custom_call.1} parent=47 // pred_check
          %p349 = pneg %p72
        $region50: #{tpu_custom_call.1} parent=47 // pred_check_branch
          %351 = sbr.rel (%p349) target = $region52
        $region51: #{tpu_custom_call.1} parent=47 // pred_region
          %352 = dma.done [#allocation3], 512
        $region52: #{tpu_custom_call.1} parent=47 // pred_fallthru
          _
        // Predicated region
        $region53: #{tpu_custom_call.1} parent=47 // pred_check
          %p353 = pneg %p93
        $region54: #{tpu_custom_call.1} parent=47 // pred_check_branch
          %355 = sbr.rel (%p353) target = $region56
        $region55: #{tpu_custom_call.1} parent=47 // pred_region
          %356 = dma.done [#allocation6], 32
        $region56: #{tpu_custom_call.1} parent=47 // pred_fallthru
          _
        // Predicated region
        $region57: #{tpu_custom_call.1} parent=47 // pred_check
          %p357 = pneg %p114
        $region58: #{tpu_custom_call.1} parent=47 // pred_check_branch
          %359 = sbr.rel (%p357) target = $region60
        $region59: #{tpu_custom_call.1} parent=47 // pred_region
          %360 = dma.done [#allocation6], 128
        $region60: #{tpu_custom_call.1} parent=47 // pred_fallthru
          _
        // Predicated region
        $region61: #{tpu_custom_call.1} parent=47 // pred_check
          %p361 = pneg %p135
        $region62: #{tpu_custom_call.1} parent=47 // pred_check_branch
          %363 = sbr.rel (%p361) target = $region64
        $region63: #{tpu_custom_call.1} parent=47 // pred_region
          %364 = dma.done [#allocation9], 128
        $region64: #{tpu_custom_call.1} parent=47 // pred_fallthru
          _
        %p365 = scmp.lt.s32.totalorder %s30, 1
        %s366 = scalar_select %p365, %s30, 1
        %s367 = smul.addr %s366, 8
        %s368 = scalar_lea.vmem %s0, %s367
        %p369 = pneg %p51
        %p370 = pneg %p48
        %p371 = pneg %p72
        %p372 = pneg %p69
        %p373 = pneg %p93
        %p374 = pneg %p90
        %p375 = pneg %p114
        %p376 = pneg %p111
        %p377 = pneg %p135
        %p378 = pneg %p132
        %p379 = pneg %p156
        %p380 = pneg %p153
        %p381 = scmp.lt.s32.totalorder %s30, 1
        %s382 = scalar_select %p381, %s30, 1
        %s383 = smul.addr %s382, 8
        %s384 = scalar_lea.vmem %s6, %s383
        %p385 = pneg %p182
        %p386 = pneg %p179
        %p387 = pneg %p208
        %p388 = pneg %p205
        %s389 = sand.u32 %s195, 1
        %s390 = scalar_lea.sflag [#allocation4], %s389
        %s391 = sand.u32 %s195, 1
        %s392 = smul.addr %s391, 4
        %s393 = scalar_lea.vmem [#allocation10], %s392
        %p394 = pneg %p234
        %p395 = pneg %p231
        %s396 = sand.u32 %s30, 1
        %s397 = scalar_lea.sflag [#allocation12], %s396
        %s398 = sand.u32 %s221, 1
        %s399 = smul.addr %s398, 4
        %s400 = scalar_lea.vmem [#allocation11], %s399
        %p401 = pneg %p260
        %p402 = pneg %p257
        %s403 = sand.u32 %s30, 1
        %s404 = scalar_lea.sflag [#allocation12], %s403
        %s405 = sand.u32 %s247, 1
        %s406 = smul.addr %s405, 4
        %s407 = scalar_lea.vmem [#allocation13], %s406
        %p408 = scmp.lt.s32.totalorder %s30, 1
        %s409 = scalar_select %p408, %s30, 1
        %s410 = smul.addr %s409, 8
        %s411 = scalar_lea.vmem %s0, %s410
        %p412 = scmp.lt.s32.totalorder %s30, 1
        %s413 = scalar_select %p412, %s30, 1
        %s414 = smul.addr %s413, 8
        %s415 = scalar_lea.vmem %s6, %s414
        %v417 = vld [vmem:[%s411] sm:$0xff]
        %v418 = vpack.c.bf16 %v417, %v417
        %v419 = vld [vmem:[#allocation2] sm:$0xff]
        %v420 = vld [vmem:[#allocation2 + $0x8] sm:$0xff]
        %v421 = vld [vmem:[#allocation2 + $0x10] sm:$0xff]
        %v422 = vld [vmem:[#allocation2 + $0x18] sm:$0xff]
        %v423 = vld [vmem:[#allocation5] sm:$0x3]
        %v425 = vlaneseq
        %v426 = vshrl.u32 %v425, 7
        %v427 = vsub.s32 0, %v426
        %v428 = vrot.slane %v423, %v427
        %v429 = vlaneseq
        %v430 = vshrl.u32 %v429, 7
        %v431 = vsub.s32 1, %v430
        %v432 = vrot.slane %v423, %v431
        %v439 = vunpack.c.l.b16 %v419
        %v440 = vunpack.c.h.b16 %v419
        %v441 = vunpack.c.l.b16 %v420
        %v442 = vunpack.c.h.b16 %v420
        %v443 = vunpack.c.l.b16 %v421
        %v444 = vunpack.c.h.b16 %v421
        %v445 = vunpack.c.l.b16 %v422
        %v446 = vunpack.c.h.b16 %v422
        %v447 = vpack.c.b16 %v441, %v439
        %v448 = vpack.c.b16 %v442, %v440
        %v449 = vpack.c.b16 %v445, %v443
        %v450 = vpack.c.b16 %v446, %v444
        %vm455 = vcmask 261120
        %v457 = vsel %vm455, %v418, 0
        %459 = vmatprep.subr.bf16.mxu0 %v448
        %460 = vmatpush1.bf16.msra.mxu0 %v447
        %461 = vmatprep.subr.bf16.mxu0 %v450
        %462 = vmatpush1.bf16.msra.mxu0 %v449
        %463 = vmatprep.subr.bf16.mxu0 0
        %464 = vmatpush1.bf16.msra.mxu0 0
        %465 = vmatprep.subr.bf16.mxu0 0
        %466 = vmatpush1.bf16.msra.mxu0 0
        %467 = vmatprep.subr.bf16.mxu0 0
        %468 = vmatpush1.bf16.msra.mxu0 0
        %469 = vmatprep.subr.bf16.mxu0 0
        %470 = vmatpush1.bf16.msra.mxu0 0
        %471 = vmatprep.subr.bf16.mxu0 0
        %472 = vmatpush1.bf16.msra.mxu0 0
        %473 = vmatprep.subr.bf16.mxu0 0
        %474 = vmatpush1.bf16.msra.mxu0 0
        %475 = vmatprep.subr.bf16.mxu0 0
        %476 = vmatpush1.bf16.msra.mxu0 0
        %477 = vmatprep.subr.bf16.mxu0 0
        %478 = vmatpush1.bf16.msra.mxu0 0
        %479 = vmatprep.subr.bf16.mxu0 0
        %480 = vmatpush1.bf16.msra.mxu0 0
        %481 = vmatprep.subr.bf16.mxu0 0
        %482 = vmatpush1.bf16.msra.mxu0 0
        %483 = vmatprep.subr.bf16.mxu0 0
        %484 = vmatpush1.bf16.msra.mxu0 0
        %485 = vmatprep.subr.bf16.mxu0 0
        %486 = vmatpush1.bf16.msra.mxu0 0
        %487 = vmatprep.subr.bf16.mxu0 0
        %488 = vmatpush1.bf16.msra.mxu0 0
        %489 = vmatprep.subr.bf16.mxu0 0
        %490 = vmatpush1.bf16.msra.mxu0 0
        %491 = vmatprep.mubr.bf16.mxu0 0
        %492 = vmatmul.mubr.bf16.gmra.mrb[0].mxu0 %v457
        %v493 = vpop.f32.mrb[0].mxu0
        %v494 = vadd.f32 %v428, %v493
        %v495 = vpop.f32.mrb[0].mxu0
        %v496 = vadd.f32 %v432, %v495
        %v497 = vpop.f32.mrb[0].mxu0
        %v498 = vpop.f32.mrb[0].mxu0
        %499 = vdwg.mxu0
        %v500 = vld [vmem:[#allocation7] sm:$0xff]
        %v501 = vld [vmem:[#allocation8] sm:$0xff]
        %v502 = vmul.f32 %v494, %v500
        %504 = vrot.lane.b32.xlu0 %v501, 32
        %v505 = vpop.permute.xlu0 %504
        %v507 = vmul.f32 %v494, %v505
        %509 = vrot.lane.b32.xlu0 %v507, 96
        %v510 = vpop.permute.xlu0 %509
        %v512 = vadd.f32 %v502, %v510
        %514 = vrot.lane.b32.xlu0 %v500, 64
        %v515 = vpop.permute.xlu0 %514
        %v517 = vmul.f32 %v494, %v515
        %518 = vrot.lane.b32.xlu0 %v501, 96
        %v519 = vpop.permute.xlu0 %518
        %v521 = vmul.f32 %v494, %v519
        %523 = vrot.lane.b32.xlu0 %v521, 96
        %v524 = vpop.permute.xlu0 %523
        %v526 = vadd.f32 %v517, %v524
        %v527 = vld [vmem:[%s5] sm:$0xf]
        %v528 = vld [vmem:[%s5 + $0x4] sm:$0xf]
        %v529 = vld [vmem:[%s5 + $0x8] sm:$0xf]
        %v530 = vld [vmem:[%s5 + $0xc] sm:$0xf]
        %v531 = vpack.c.bf16 %v512, %v512
        %v536 = vunpack.c.l.b16 %v527
        %v537 = vunpack.c.l.b16 %v528
        %v538 = vunpack.c.l.b16 %v529
        %v539 = vunpack.c.l.b16 %v530
        %v540 = vpack.c.b16 %v537, %v536
        %v541 = vpack.c.b16 %v539, %v538
        %v545 = vsel %vm455, %v531, 0
        %547 = vmatprep.subr.bf16.mxu0 0
        %548 = vmatpush1.bf16.msra.mxu0 %v540
        %549 = vmatprep.subr.bf16.mxu0 0
        %550 = vmatpush1.bf16.msra.mxu0 %v541
        %551 = vmatprep.subr.bf16.mxu0 0
        %552 = vmatpush1.bf16.msra.mxu0 0
        %553 = vmatprep.subr.bf16.mxu0 0
        %554 = vmatpush1.bf16.msra.mxu0 0
        %555 = vmatprep.subr.bf16.mxu0 0
        %556 = vmatpush1.bf16.msra.mxu0 0
        %557 = vmatprep.subr.bf16.mxu0 0
        %558 = vmatpush1.bf16.msra.mxu0 0
        %559 = vmatprep.subr.bf16.mxu0 0
        %560 = vmatpush1.bf16.msra.mxu0 0
        %561 = vmatprep.subr.bf16.mxu0 0
        %562 = vmatpush1.bf16.msra.mxu0 0
        %563 = vmatprep.subr.bf16.mxu0 0
        %564 = vmatpush1.bf16.msra.mxu0 0
        %565 = vmatprep.subr.bf16.mxu0 0
        %566 = vmatpush1.bf16.msra.mxu0 0
        %567 = vmatprep.subr.bf16.mxu0 0
        %568 = vmatpush1.bf16.msra.mxu0 0
        %569 = vmatprep.subr.bf16.mxu0 0
        %570 = vmatpush1.bf16.msra.mxu0 0
        %571 = vmatprep.subr.bf16.mxu0 0
        %572 = vmatpush1.bf16.msra.mxu0 0
        %573 = vmatprep.subr.bf16.mxu0 0
        %574 = vmatpush1.bf16.msra.mxu0 0
        %575 = vmatprep.subr.bf16.mxu0 0
        %576 = vmatpush1.bf16.msra.mxu0 0
        %577 = vmatprep.subr.bf16.mxu0 0
        %578 = vmatpush1.bf16.msra.mxu0 0
        %579 = vmatprep.mubr.bf16.mxu0 0
        %580 = vmatmul.mubr.bf16.gmra.mrb[0].mxu0 %v545
        %v581 = vpop.f32.mrb[0].mxu0
        %v582 = vadd.f32 0.0, %v581
        %v583 = vpop.f32.mrb[0].mxu0
        %v584 = vpop.f32.mrb[0].mxu0
        %v585 = vpop.f32.mrb[0].mxu0
        %586 = vdwg.mxu0
        %v587 = vmax.f32 %v582, 0.0
        %v588 = vpack.c.bf16 %v526, %v526
        %590 = vrot.lane.b32.xlu0 %v588, 64
        %v591 = vpop.permute.xlu0 %590
        %v593 = vsel %vm455, %v591, 0
        %595 = vmatprep.subr.bf16.mxu0 0
        %596 = vmatpush1.bf16.msra.mxu0 %v540
        %597 = vmatprep.subr.bf16.mxu0 0
        %598 = vmatpush1.bf16.msra.mxu0 %v541
        %599 = vmatprep.subr.bf16.mxu0 0
        %600 = vmatpush1.bf16.msra.mxu0 0
        %601 = vmatprep.subr.bf16.mxu0 0
        %602 = vmatpush1.bf16.msra.mxu0 0
        %603 = vmatprep.subr.bf16.mxu0 0
        %604 = vmatpush1.bf16.msra.mxu0 0
        %605 = vmatprep.subr.bf16.mxu0 0
        %606 = vmatpush1.bf16.msra.mxu0 0
        %607 = vmatprep.subr.bf16.mxu0 0
        %608 = vmatpush1.bf16.msra.mxu0 0
        %609 = vmatprep.subr.bf16.mxu0 0
        %610 = vmatpush1.bf16.msra.mxu0 0
        %611 = vmatprep.subr.bf16.mxu0 0
        %612 = vmatpush1.bf16.msra.mxu0 0
        %613 = vmatprep.subr.bf16.mxu0 0
        %614 = vmatpush1.bf16.msra.mxu0 0
        %615 = vmatprep.subr.bf16.mxu0 0
        %616 = vmatpush1.bf16.msra.mxu0 0
        %617 = vmatprep.subr.bf16.mxu0 0
        %618 = vmatpush1.bf16.msra.mxu0 0
        %619 = vmatprep.subr.bf16.mxu0 0
        %620 = vmatpush1.bf16.msra.mxu0 0
        %621 = vmatprep.subr.bf16.mxu0 0
        %622 = vmatpush1.bf16.msra.mxu0 0
        %623 = vmatprep.subr.bf16.mxu0 0
        %624 = vmatpush1.bf16.msra.mxu0 0
        %625 = vmatprep.subr.bf16.mxu0 0
        %626 = vmatpush1.bf16.msra.mxu0 0
        %627 = vmatprep.mubr.bf16.mxu0 0
        %628 = vmatmul.mubr.bf16.gmra.mrb[0].mxu0 %v593
        %v629 = vpop.f32.mrb[0].mxu0
        %v630 = vadd.f32 0.0, %v629
        %v631 = vpop.f32.mrb[0].mxu0
        %v632 = vpop.f32.mrb[0].mxu0
        %v633 = vpop.f32.mrb[0].mxu0
        %634 = vdwg.mxu0
        %v635 = vmax.f32 %v630, 0.0
        %v636 = vld [vmem:[%s415] sm:$0xff]
        %638 = vset.pattern.permute.xlu0 0
        %639 = vperm.xlu0 %638, %v636
        %v640 = vpop.permute.xlu0 %639
        %v642 = vmul.f32 %v635, %v640
        %v643 = vpack.c.bf16 %v587, %v587
        %vm644 = vcmask 257024
        %645 = vst.msk [vmem:[%s393] sm:$0xf] %vm644, %v643
        %v646 = vpack.c.bf16 %v642, %v642
        %647 = vst.msk [vmem:[%s400] sm:$0xf] %vm644, %v646
        %v648 = vpack.c.bf16 %v496, %v496
        %649 = vst.msk [vmem:[%s407] sm:$0xf] %vm644, %v648
        %s650 = sand.u32 %s195, 1
        %s651 = scalar_lea.sflag [#allocation4], %s650
        %s652 = sand.u32 %s195, 1
        %s653 = smul.addr %s652, 4
        %s654 = scalar_lea.vmem [#allocation10], %s653
        %s655 = sand.u32 %s30, 1
        %s656 = scalar_lea.sflag [#allocation12], %s655
        %s657 = sand.u32 %s221, 1
        %s658 = smul.addr %s657, 4
        %s659 = scalar_lea.vmem [#allocation11], %s658
        %s660 = sand.u32 %s30, 1
        %s661 = scalar_lea.sflag [#allocation12], %s660
        %s662 = sand.u32 %s247, 1
        %s663 = smul.addr %s662, 4
        %s664 = scalar_lea.vmem [#allocation13], %s663
        // Predicated region
        $region65: #{tpu_custom_call.1} parent=47 // pred_check
          %p665 = pneg %p205
        $region66: #{tpu_custom_call.1} parent=47 // pred_check_branch
          %667 = sbr.rel (%p665) target = $region68
        $region67: #{tpu_custom_call.1} parent=47 // pred_region
          %s669 = ssub.s32 64, 64
          %670 = vsyncadd %s651, %s669
          %s671 = smul.addr %s30, 64
          %s672 = scalar_lea.hbm %s7, %s671
          %s674 = sshll.u32 %s654, 4
          %s675 = int_to_ptr.vmem [resolvable:$true] %s674
          %677 = dma.vmem_to_hbm [thread:$0]  %s675, 64, %s672, %s651
        $region68: #{tpu_custom_call.1} parent=47 // pred_fallthru
          _
        // Predicated region
        $region69: #{tpu_custom_call.1} parent=47 // pred_check
          %p678 = pneg %p231
        $region70: #{tpu_custom_call.1} parent=47 // pred_check_branch
          %680 = sbr.rel (%p678) target = $region72
        $region71: #{tpu_custom_call.1} parent=47 // pred_region
          %s682 = ssub.s32 64, 64
          %683 = vsyncadd %s656, %s682
          %s684 = smul.addr %s30, 64
          %s685 = scalar_lea.hbm %s8, %s684
          %s687 = sshll.u32 %s659, 4
          %s688 = int_to_ptr.vmem [resolvable:$true] %s687
          %690 = dma.vmem_to_hbm [thread:$0]  %s688, 64, %s685, %s656
        $region72: #{tpu_custom_call.1} parent=47 // pred_fallthru
          _
        // Predicated region
        $region73: #{tpu_custom_call.1} parent=47 // pred_check
          %p691 = pneg %p257
        $region74: #{tpu_custom_call.1} parent=47 // pred_check_branch
          %693 = sbr.rel (%p691) target = $region76
        $region75: #{tpu_custom_call.1} parent=47 // pred_region
          %s695 = ssub.s32 64, 64
          %696 = vsyncadd %s661, %s695
          %s697 = smul.addr %s30, 64
          %s698 = scalar_lea.hbm %s9, %s697
          %s700 = sshll.u32 %s664, 4
          %s701 = int_to_ptr.vmem [resolvable:$true] %s700
          %703 = dma.vmem_to_hbm [thread:$0]  %s701, 64, %s698, %s661
        $region76: #{tpu_custom_call.1} parent=47 // pred_fallthru
          _
      $region48: #{tpu_custom_call.1} parent=5 // pred_fallthru
        _
      %p704 = scmp.le.s32.totalorder 2, %s25
      // Predicated region
      $region77: #{tpu_custom_call.1} parent=5 // pred_check
        %p705 = pneg %p704
      $region78: #{tpu_custom_call.1} parent=5 // pred_check_branch
        %707 = sbr.rel (%p705) target = $region80
      $region79: #{tpu_custom_call.1} parent=5 // pred_region
        %s708 = ssub.s32 %s25, 2
        // Predicated region
        $region81: #{tpu_custom_call.1} parent=79 // pred_check
          %p709 = pneg %p211
        $region82: #{tpu_custom_call.1} parent=79 // pred_check_branch
          %711 = sbr.rel (%p709) target = $region84
        $region83: #{tpu_custom_call.1} parent=79 // pred_region
          %s712 = sand.u32 %s196, 1
          %s713 = scalar_lea.sflag [#allocation4], %s712
          %s714 = sand.u32 %s196, 1
          %s715 = smul.addr %s714, 4
          %s716 = scalar_lea.vmem [#allocation10], %s715
          %717 = dma.done %s713, 64
        $region84: #{tpu_custom_call.1} parent=79 // pred_fallthru
          _
        // Predicated region
        $region85: #{tpu_custom_call.1} parent=79 // pred_check
          %p718 = pneg %p237
        $region86: #{tpu_custom_call.1} parent=79 // pred_check_branch
          %720 = sbr.rel (%p718) target = $region88
        $region87: #{tpu_custom_call.1} parent=79 // pred_region
          %s721 = sand.u32 %s31, 1
          %s722 = scalar_lea.sflag [#allocation12], %s721
          %s723 = sand.u32 %s222, 1
          %s724 = smul.addr %s723, 4
          %s725 = scalar_lea.vmem [#allocation11], %s724
          %726 = dma.done %s722, 64
        $region88: #{tpu_custom_call.1} parent=79 // pred_fallthru
          _
        // Predicated region
        $region89: #{tpu_custom_call.1} parent=79 // pred_check
          %p727 = pneg %p263
        $region90: #{tpu_custom_call.1} parent=79 // pred_check_branch
          %729 = sbr.rel (%p727) target = $region92
        $region91: #{tpu_custom_call.1} parent=79 // pred_region
          %s730 = sand.u32 %s31, 1
          %s731 = scalar_lea.sflag [#allocation12], %s730
          %s732 = sand.u32 %s248, 1
          %s733 = smul.addr %s732, 4
          %s734 = scalar_lea.vmem [#allocation13], %s733
          %735 = dma.done %s731, 64
        $region92: #{tpu_custom_call.1} parent=79 // pred_fallthru
          _
      $region80: #{tpu_custom_call.1} parent=5 // pred_fallthru
        _
    $region6: #{tpu_custom_call.1} parent=1 // loop_footer
      %s29 = sadd.s32 1, %s25
    $region7: #{tpu_custom_call.1} parent=1 // loop_footer_branch
      %24 = sbr.rel target = $region3
    $region8: #{tpu_custom_call.1} parent=1 // loop_exit
      _
    %736 = vsyncpa [#allocation3], 1
    %s737 = scalar_lea.sflag [#allocation3], 1
    %738 = vsyncpa %s737, 1
    %739 = vsyncpa [#allocation6], 1
    %740 = vsyncpa [#allocation9], 1
    %741 = vsyncpa [#allocation4], 1
    %s742 = scalar_lea.sflag [#allocation4], 1
    %743 = vsyncpa %s742, 1
    %744 = vsyncpa [#allocation12], 1
    %s745 = scalar_lea.sflag [#allocation12], 1
    %746 = vsyncpa %s745, 1

</llo_original>
